<compile_context>
chip_gen: v7x
topology: tpu7x:2x2x1
jax: 0.10.0
libtpu: 0.0.40
codegen_flags: <defaults>
</compile_context>

<pallas_src>
import functools
import numpy as np
import jax
import jax.numpy as jnp
from jax.experimental import pallas as pl
from jax.experimental.pallas import tpu as pltpu


# ----------------------------------------------------------------------------
# Fixed (deterministic) DCT filter bank, identical to HarmonicBlock.get_filter_bank
# ----------------------------------------------------------------------------
def dct_matrix_t2(N):
    res = np.zeros((N, N), dtype=np.float64)
    for k in range(N):
        for n in range(N):
            res[k, n] = np.cos(np.pi / N * (n + 0.5) * k)
    return res


def build_dct_filter_flat(K):
    """Returns D of shape (K*K, K*K): D[i*K+j, p*K+q] = mat[i,p]*mat[j,q]."""
    mat = dct_matrix_t2(K)
    D = np.zeros((K * K, K * K), dtype=np.float64)
    for i in range(K):
        for j in range(K):
            f = i * K + j
            fltr = mat[i, :K].reshape(-1, 1) @ mat[j, :K].reshape(1, -1)
            D[f] = fltr.reshape(-1)
    return D


# ----------------------------------------------------------------------------
# Pallas kernel: B images per grid step, whole-image compute, lane-dense HW.
# ----------------------------------------------------------------------------
def harmonic_block_kernel(x_ref, mask_ref, bn_scale_ref, bn_shift_ref, w_ref,
                          sc_shift_ref, o_ref, z_ref,
                          *, mat, shifts, K, H, W, Cp, B):
    KK = K * K
    HW = H * W
    rows_dct = KK * Cp

    # Boundary masks and folded-BN params: read once per grid step (hoisted out
    # of the per-image loop).
    masks = [mask_ref[pq:pq + 1, :] for pq in range(KK)]              # (1, HW)
    bn_sc = [bn_scale_ref[f * Cp:(f + 1) * Cp, :] for f in range(KK)]  # (Cp, 1)
    bn_sh = [bn_shift_ref[f * Cp:(f + 1) * Cp, :] for f in range(KK)]  # (Cp, 1)

    for b in range(B):
        xb = x_ref[b].astype(jnp.float32)                              # (Cp, HW)

        # 1) K*K shifted slabs: XLU lane roll + zero-mask of wrapped lanes
        #    (the wrapped positions are exactly the conv padding positions).
        slab = []
        for pq in range(KK):
            s = shifts[pq]
            r = xb if s == 0 else pltpu.roll(xb, shift=s, axis=1)
            slab.append(r * masks[pq])

        # 2) Separable DCT-II depthwise transform (row pass then column pass;
        #    fixed coefficients baked in, zero taps skipped, +/-1 add directly).
        row_t = [[None] * K for _ in range(K)]                         # [p][j]
        for p in range(K):
            for j in range(K):
                acc = None
                for q in range(K):
                    c = float(mat[j, q])
                    if abs(c) < 1e-12:
                        continue
                    t = slab[p * K + q]
                    t = t if c == 1.0 else (-t if c == -1.0 else c * t)
                    acc = t if acc is None else acc + t
                row_t[p][j] = acc

        for i in range(K):
            for j in range(K):
                f = i * K + j
                acc = None
                for p in range(K):
                    c = float(mat[i, p])
                    if abs(c) < 1e-12 or row_t[p][j] is None:
                        continue
                    t = row_t[p][j]
                    t = t if c == 1.0 else (-t if c == -1.0 else c * t)
                    acc = t if acc is None else acc + t
                if acc is None:
                    acc = jnp.zeros((Cp, HW), jnp.float32)
                # 3) Folded eval-mode BN + ReLU, written straight into aligned
                #    scratch rows (no concatenate, unmasked stores).
                z_ref[f * Cp:(f + 1) * Cp, b * HW:(b + 1) * HW] = (
                    jnp.maximum(acc * bn_sc[f] + bn_sh[f], 0.0))

        # 4) Residual (shortcut) input rows.
        z_ref[rows_dct:rows_dct + Cp, b * HW:(b + 1) * HW] = xb

    # 5) Fused 1x1 conv (main) + BN-folded 1x1 shortcut: a single bf16 MXU
    #    matmul over all B images, f32 accumulation.
    out = jnp.dot(w_ref[...], z_ref[...].astype(w_ref.dtype),
                  preferred_element_type=jnp.float32)                  # (O, B*HW)

    # 6) Shortcut BN shift + final ReLU (f32), lane-dense aligned stores.
    out = jnp.maximum(out + sc_shift_ref[...], 0.0)
    for b in range(B):
        o_ref[b] = out[:, b * HW:(b + 1) * HW]


def _pick_block_batch(N, KK, Cp, HW, rows, O, requested=None):
    if requested is None:
        per_image = ((2 * KK + 4) * Cp * HW * 4     # live f32 slabs/intermediates
                     + rows * HW * 4                # z scratch rows
                     + 2 * Cp * HW * 2              # double-buffered bf16 input
                     + 2 * O * HW * 4)              # double-buffered f32 output
        budget = 12 * 1024 * 1024
        B = max(1, budget // per_image)
        if N >= 2:
            B = min(B, N // 2)   # keep >=2 grid steps for v7x's two TensorCores
    else:
        B = max(1, int(requested))
    B = min(B, N)
    while N % B:                 # B must divide N (no ragged tail handling)
        B -= 1
    return int(B)


def _harmonic_pallas(x_k, masks, bn_scale_k, bn_shift_k, w_comb, sc_shift,
                     *, mat, shifts, K, H, W, Cp, O, B):
    N = x_k.shape[0]
    KK = K * K
    HW = H * W
    rows = KK * Cp + Cp
    grid = (N // B,)

    kern = functools.partial(harmonic_block_kernel, mat=mat, shifts=shifts,
                             K=K, H=H, W=W, Cp=Cp, B=B)

    nnz = int(np.count_nonzero(np.abs(mat) > 1e-12))
    flops_per_img = (2 * KK * Cp * HW                # roll + mask apply
                     + 4 * K * nnz * Cp * HW         # separable DCT (row + col)
                     + 3 * KK * Cp * HW              # BN scale/shift + ReLU
                     + 2 * O * rows * HW             # fused 1x1 MXU matmul
                     + 2 * O * HW)                   # shortcut shift + ReLU
    flops = int(N * flops_per_img)
    bytes_accessed = int(N * Cp * HW * 2 + N * O * HW * 4 + KK * HW * 4
                         + w_comb.size * 2
                         + (bn_scale_k.size + bn_shift_k.size + sc_shift.size) * 4)

    vmem_est = ((2 * KK + 4) * Cp * HW * 4 + rows * B * HW * 4
                + 2 * B * Cp * HW * 2 + 2 * B * O * HW * 4
                + KK * HW * 4 + 2 * KK * Cp * 128 * 4 + O * 128 * 6)
    vmem_limit = int(min(48 * 2 ** 20, max(32 * 2 ** 20, 3 * vmem_est)))

    out = pl.pallas_call(
        kern,
        out_shape=jax.ShapeDtypeStruct((N, O, HW), jnp.float32),
        grid_spec=pltpu.PrefetchScalarGridSpec(
            num_scalar_prefetch=0,
            grid=grid,
            in_specs=[
                pl.BlockSpec((B, Cp, HW), lambda n: (n, 0, 0)),
                pl.BlockSpec((KK, HW), lambda n: (0, 0)),
                pl.BlockSpec((KK * Cp, 1), lambda n: (0, 0)),
                pl.BlockSpec((KK * Cp, 1), lambda n: (0, 0)),
                pl.BlockSpec((O, rows), lambda n: (0, 0)),
                pl.BlockSpec((O, 1), lambda n: (0, 0)),
            ],
            out_specs=pl.BlockSpec((B, O, HW), lambda n: (n, 0, 0)),
            scratch_shapes=[pltpu.VMEM((rows, B * HW), jnp.float32)],
        ),
        compiler_params=pltpu.CompilerParams(
            dimension_semantics=("parallel",),
            vmem_limit_bytes=vmem_limit),
        cost_estimate=pl.CostEstimate(flops=flops, transcendentals=0,
                                      bytes_accessed=bytes_accessed),
    )(x_k, masks, bn_scale_k, bn_shift_k, w_comb, sc_shift)
    return out


# ----------------------------------------------------------------------------
# Module-equivalent forward (eval-mode BN, conv+BN shortcut branch).
# ----------------------------------------------------------------------------
def harmonic_block_forward(x, gamma, beta, rmean, rvar, w1, wsc, g2, b2, m2, v2,
                           *, K=3, pad=1, eps=1e-5, block_batch=None):
    # NOTE: assumes stride=1 "same" padding, bias=False, eval-mode BN, and the
    # conv+BN shortcut (in_channels != out_channels), i.e. the module defaults.
    N, C, H, W = x.shape
    assert 2 * pad == K - 1, "kernel assumes stride=1 'same' padding"
    O = w1.shape[0]
    KK = K * K
    HW = H * W
    Cp = -(-C // 8) * 8                                   # channels -> 8 sublanes
    rows = KK * Cp + Cp

    # ---- fold eval-mode BN into scale/shift; reorder channels c*KK+f -> f*Cp+c
    bn_scale = gamma / jnp.sqrt(rvar + eps)
    bn_shift = beta - rmean * bn_scale

    def to_kernel_rows(v):                                # (C*KK,) -> (KK*Cp, 1)
        v = v.reshape(C, KK).T                            # (KK, C)
        v = jnp.pad(v, ((0, 0), (0, Cp - C)))             # (KK, Cp)
        return v.reshape(KK * Cp, 1).astype(jnp.float32)

    bn_scale_k = to_kernel_rows(bn_scale)
    bn_shift_k = to_kernel_rows(bn_shift)

    # ---- fold shortcut BN scale into its 1x1 weights; fuse main + shortcut
    w1_k = w1.reshape(O, C, KK).transpose(0, 2, 1)        # (O, KK, C)
    w1_k = jnp.pad(w1_k, ((0, 0), (0, 0), (0, Cp - C))).reshape(O, KK * Cp)
    sc_s = g2 / jnp.sqrt(v2 + eps)
    wsc_f = jnp.pad(wsc * sc_s[:, None], ((0, 0), (0, Cp - C)))
    w_comb = jnp.concatenate([w1_k, wsc_f], axis=1).astype(jnp.bfloat16)
    sc_shift = (b2 - m2 * sc_s).reshape(O, 1).astype(jnp.float32)

    # ---- lane-dense bf16 input (no spatial padding), zero-pad channels to Cp
    x_k = x.reshape(N, C, HW).astype(jnp.bfloat16)
    x_k = jnp.pad(x_k, ((0, 0), (0, Cp - C), (0, 0)))

    # ---- static tap shifts + boundary masks (numpy, baked at trace time)
    mat = dct_matrix_t2(K)
    ii = np.arange(HW)
    hh, ww = ii // W, ii % W
    shifts = []
    masks_np = np.zeros((KK, HW), np.float32)
    for p in range(K):
        for q in range(K):
            dp, dq = p - pad, q - pad
            shifts.append(int((-(dp * W + dq)) % HW))
            valid = ((hh + dp >= 0) & (hh + dp < H) &
                     (ww + dq >= 0) & (ww + dq < W))
            masks_np[p * K + q] = valid.astype(np.float32)
    masks = jnp.asarray(masks_np)

    B = _pick_block_batch(N, KK, Cp, HW, rows, O, requested=block_batch)

    out = _harmonic_pallas(x_k, masks, bn_scale_k, bn_shift_k, w_comb, sc_shift,
                           mat=mat, shifts=tuple(shifts), K=K, H=H, W=W,
                           Cp=Cp, O=O, B=B)
    return out.reshape(N, O, H, W)


# ----------------------------------------------------------------------------
# Pure-numpy (float64) reference of the PyTorch forward (eval-mode BN).
# ----------------------------------------------------------------------------
def reference_numpy(x, D, gamma, beta, rmean, rvar, w1, wsc, g2, b2, m2, v2,
                    K, pad):
    x = np.asarray(x, np.float64)
    N, C, H, W = x.shape
    KK = K * K
    xp = np.pad(x, ((0, 0), (0, 0), (pad, pad), (pad, pad)))
    y = np.zeros((N, C * KK, H, W))
    for c in range(C):
        for f in range(KK):
            ker = D[f].reshape(K, K)
            for p in range(K):
                for q in range(K):
                    y[:, c * KK + f] += ker[p, q] * xp[:, c, p:p + H, q:q + W]
    eps = 1e-5
    scale = gamma / np.sqrt(rvar + eps)
    shift = beta - rmean * scale
    y = np.maximum(y * scale[None, :, None, None] + shift[None, :, None, None], 0.0)
    out = np.einsum('oc,nchw->nohw', w1, y)
    sc = np.einsum('oc,nchw->nohw', wsc, x)
    s2 = g2 / np.sqrt(v2 + eps)
    sh2 = b2 - m2 * s2
    sc = sc * s2[None, :, None, None] + sh2[None, :, None, None]
    return np.maximum(out + sc, 0.0)


if __name__ == "__main__":
    N, C, O, H, W, K, pad = 2, 4, 8, 16, 16, 3, 1
    KK = K * K
    eps = 1e-5

    key = jax.random.PRNGKey(0)
    ks = jax.random.split(key, 10)
    x = jax.random.normal(ks[0], (N, C, H, W), jnp.float32)

    # Synthetic parameters (PyTorch channel order = c*KK + f).
    gamma = jax.random.uniform(ks[1], (C * KK,), minval=0.5, maxval=1.5)
    beta  = 0.1 * jax.random.normal(ks[2], (C * KK,))
    rmean = 0.1 * jax.random.normal(ks[3], (C * KK,))
    rvar  = jax.random.uniform(ks[4], (C * KK,), minval=0.5, maxval=1.5)
    w1    = jax.random.normal(ks[5], (O, C * KK)) / np.sqrt(C * KK)   # 1x1 conv, bias=False
    wsc   = jax.random.normal(ks[6], (O, C)) / np.sqrt(C)             # shortcut 1x1 conv
    g2    = jax.random.uniform(ks[7], (O,), minval=0.5, maxval=1.5)
    b2    = 0.1 * jax.random.normal(ks[8], (O,))
    m2    = 0.1 * jax.random.normal(ks[9], (O,))
    v2    = jnp.ones((O,), jnp.float32)

    # Fixed DCT-II filter bank for the reference (a deterministic buffer).
    D = build_dct_filter_flat(K)

    # Run once with the auto block-batch (B=1 -> 2 parallel grid steps) and once
    # with 2 images per grid step (exercises the batched MXU path).
    fn_a = jax.jit(functools.partial(harmonic_block_forward, K=K, pad=pad))
    fn_b = jax.jit(functools.partial(harmonic_block_forward, K=K, pad=pad,
                                     block_batch=2))
    out_a = jax.block_until_ready(fn_a(x, gamma, beta, rmean, rvar,
                                       w1, wsc, g2, b2, m2, v2))
    out_b = jax.block_until_ready(fn_b(x, gamma, beta, rmean, rvar,
                                       w1, wsc, g2, b2, m2, v2))

    ref = reference_numpy(np.asarray(x), D,
                          np.asarray(gamma, np.float64), np.asarray(beta, np.float64),
                          np.asarray(rmean, np.float64), np.asarray(rvar, np.float64),
                          np.asarray(w1, np.float64), np.asarray(wsc, np.float64),
                          np.asarray(g2, np.float64), np.asarray(b2, np.float64),
                          np.asarray(m2, np.float64), np.asarray(v2, np.float64),
                          K, pad)
    assert out_a.shape == (N, O, H, W)
    assert out_b.shape == (N, O, H, W)
    err_a = float(np.max(np.abs(np.asarray(out_a, np.float64) - ref)))
    err_b = float(np.max(np.abs(np.asarray(out_b, np.float64) - ref)))
    assert np.allclose(np.asarray(out_a, np.float64), ref, rtol=3e-2, atol=1e-1), err_a
    assert np.allclose(np.asarray(out_b, np.float64), ref, rtol=3e-2, atol=1e-1), err_b
    print("KERNEL_OK")
</pallas_src>

<mosaic_0001>
module attributes {stable_mosaic.version = 11 : i64} {
  func.func @harmonic_block_kernel(%arg0: i32, %arg1: memref<1x8x256xbf16, #tpu.memory_space<vmem>>, %arg2: memref<9x256xf32, #tpu.memory_space<vmem>>, %arg3: memref<72x1xf32, #tpu.memory_space<vmem>>, %arg4: memref<72x1xf32, #tpu.memory_space<vmem>>, %arg5: memref<8x80xbf16, #tpu.memory_space<vmem>>, %arg6: memref<8x1xf32, #tpu.memory_space<vmem>>, %arg7: memref<1x8x256xf32, #tpu.memory_space<vmem>>, %arg8: memref<80x256xf32, #tpu.memory_space<vmem>>) attributes {dimension_semantics = [#tpu.dimension_semantics<parallel>], iteration_bounds = array<i64: 2>, scalar_prefetch = 0 : i64, scratch_operands = 1 : i64, tpu.core_type = #tpu.core_type<tc>, window_params = [{transform_indices = @transform_0, window_bounds = array<i64: 1, 8, 256>}, {pipeline_mode = #tpu.pipeline_mode<synchronous>, transform_indices = @transform_1, window_bounds = array<i64: 9, 256>}, {pipeline_mode = #tpu.pipeline_mode<synchronous>, transform_indices = @transform_2, window_bounds = array<i64: 72, 1>}, {pipeline_mode = #tpu.pipeline_mode<synchronous>, transform_indices = @transform_3, window_bounds = array<i64: 72, 1>}, {pipeline_mode = #tpu.pipeline_mode<synchronous>, transform_indices = @transform_4, window_bounds = array<i64: 8, 80>}, {pipeline_mode = #tpu.pipeline_mode<synchronous>, transform_indices = @transform_5, window_bounds = array<i64: 8, 1>}, {transform_indices = @transform_6, window_bounds = array<i64: 1, 8, 256>}]} {
    %c0 = arith.constant 0 : index
    %c0_0 = arith.constant 0 : index
    %0 = vector.load %arg2[%c0, %c0_0] : memref<9x256xf32, #tpu.memory_space<vmem>>, vector<1x256xf32>
    %c1 = arith.constant 1 : index
    %c0_1 = arith.constant 0 : index
    %1 = vector.load %arg2[%c1, %c0_1] : memref<9x256xf32, #tpu.memory_space<vmem>>, vector<1x256xf32>
    %c2 = arith.constant 2 : index
    %c0_2 = arith.constant 0 : index
    %2 = vector.load %arg2[%c2, %c0_2] : memref<9x256xf32, #tpu.memory_space<vmem>>, vector<1x256xf32>
    %c3 = arith.constant 3 : index
    %c0_3 = arith.constant 0 : index
    %3 = vector.load %arg2[%c3, %c0_3] : memref<9x256xf32, #tpu.memory_space<vmem>>, vector<1x256xf32>
    %c4 = arith.constant 4 : index
    %c0_4 = arith.constant 0 : index
    %4 = vector.load %arg2[%c4, %c0_4] : memref<9x256xf32, #tpu.memory_space<vmem>>, vector<1x256xf32>
    %c5 = arith.constant 5 : index
    %c0_5 = arith.constant 0 : index
    %5 = vector.load %arg2[%c5, %c0_5] : memref<9x256xf32, #tpu.memory_space<vmem>>, vector<1x256xf32>
    %c6 = arith.constant 6 : index
    %c0_6 = arith.constant 0 : index
    %6 = vector.load %arg2[%c6, %c0_6] : memref<9x256xf32, #tpu.memory_space<vmem>>, vector<1x256xf32>
    %c7 = arith.constant 7 : index
    %c0_7 = arith.constant 0 : index
    %7 = vector.load %arg2[%c7, %c0_7] : memref<9x256xf32, #tpu.memory_space<vmem>>, vector<1x256xf32>
    %c8 = arith.constant 8 : index
    %c0_8 = arith.constant 0 : index
    %8 = vector.load %arg2[%c8, %c0_8] : memref<9x256xf32, #tpu.memory_space<vmem>>, vector<1x256xf32>
    %c0_9 = arith.constant 0 : index
    %c0_10 = arith.constant 0 : index
    %9 = vector.load %arg3[%c0_9, %c0_10] : memref<72x1xf32, #tpu.memory_space<vmem>>, vector<8x1xf32>
    %c8_11 = arith.constant 8 : index
    %c0_12 = arith.constant 0 : index
    %10 = vector.load %arg3[%c8_11, %c0_12] : memref<72x1xf32, #tpu.memory_space<vmem>>, vector<8x1xf32>
    %c16 = arith.constant 16 : index
    %c0_13 = arith.constant 0 : index
    %11 = vector.load %arg3[%c16, %c0_13] : memref<72x1xf32, #tpu.memory_space<vmem>>, vector<8x1xf32>
    %c24 = arith.constant 24 : index
    %c0_14 = arith.constant 0 : index
    %12 = vector.load %arg3[%c24, %c0_14] : memref<72x1xf32, #tpu.memory_space<vmem>>, vector<8x1xf32>
    %c32 = arith.constant 32 : index
    %c0_15 = arith.constant 0 : index
    %13 = vector.load %arg3[%c32, %c0_15] : memref<72x1xf32, #tpu.memory_space<vmem>>, vector<8x1xf32>
    %c40 = arith.constant 40 : index
    %c0_16 = arith.constant 0 : index
    %14 = vector.load %arg3[%c40, %c0_16] : memref<72x1xf32, #tpu.memory_space<vmem>>, vector<8x1xf32>
    %c48 = arith.constant 48 : index
    %c0_17 = arith.constant 0 : index
    %15 = vector.load %arg3[%c48, %c0_17] : memref<72x1xf32, #tpu.memory_space<vmem>>, vector<8x1xf32>
    %c56 = arith.constant 56 : index
    %c0_18 = arith.constant 0 : index
    %16 = vector.load %arg3[%c56, %c0_18] : memref<72x1xf32, #tpu.memory_space<vmem>>, vector<8x1xf32>
    %c64 = arith.constant 64 : index
    %c0_19 = arith.constant 0 : index
    %17 = vector.load %arg3[%c64, %c0_19] : memref<72x1xf32, #tpu.memory_space<vmem>>, vector<8x1xf32>
    %c0_20 = arith.constant 0 : index
    %c0_21 = arith.constant 0 : index
    %18 = vector.load %arg4[%c0_20, %c0_21] : memref<72x1xf32, #tpu.memory_space<vmem>>, vector<8x1xf32>
    %c8_22 = arith.constant 8 : index
    %c0_23 = arith.constant 0 : index
    %19 = vector.load %arg4[%c8_22, %c0_23] : memref<72x1xf32, #tpu.memory_space<vmem>>, vector<8x1xf32>
    %c16_24 = arith.constant 16 : index
    %c0_25 = arith.constant 0 : index
    %20 = vector.load %arg4[%c16_24, %c0_25] : memref<72x1xf32, #tpu.memory_space<vmem>>, vector<8x1xf32>
    %c24_26 = arith.constant 24 : index
    %c0_27 = arith.constant 0 : index
    %21 = vector.load %arg4[%c24_26, %c0_27] : memref<72x1xf32, #tpu.memory_space<vmem>>, vector<8x1xf32>
    %c32_28 = arith.constant 32 : index
    %c0_29 = arith.constant 0 : index
    %22 = vector.load %arg4[%c32_28, %c0_29] : memref<72x1xf32, #tpu.memory_space<vmem>>, vector<8x1xf32>
    %c40_30 = arith.constant 40 : index
    %c0_31 = arith.constant 0 : index
    %23 = vector.load %arg4[%c40_30, %c0_31] : memref<72x1xf32, #tpu.memory_space<vmem>>, vector<8x1xf32>
    %c48_32 = arith.constant 48 : index
    %c0_33 = arith.constant 0 : index
    %24 = vector.load %arg4[%c48_32, %c0_33] : memref<72x1xf32, #tpu.memory_space<vmem>>, vector<8x1xf32>
    %c56_34 = arith.constant 56 : index
    %c0_35 = arith.constant 0 : index
    %25 = vector.load %arg4[%c56_34, %c0_35] : memref<72x1xf32, #tpu.memory_space<vmem>>, vector<8x1xf32>
    %c64_36 = arith.constant 64 : index
    %c0_37 = arith.constant 0 : index
    %26 = vector.load %arg4[%c64_36, %c0_37] : memref<72x1xf32, #tpu.memory_space<vmem>>, vector<8x1xf32>
    %c0_38 = arith.constant 0 : index
    %c0_39 = arith.constant 0 : index
    %c0_40 = arith.constant 0 : index
    %27 = vector.load %arg1[%c0_38, %c0_39, %c0_40] : memref<1x8x256xbf16, #tpu.memory_space<vmem>>, vector<1x8x256xbf16>
    %28 = vector.shape_cast %27 : vector<1x8x256xbf16> to vector<8x256xbf16>
    %29 = arith.extf %28 : vector<8x256xbf16> to vector<8x256xf32>
    %c17_i32 = arith.constant 17 : i32
    %30 = tpu.dynamic_rotate %29 by %c17_i32 dim 1 : vector<8x256xf32>, i32 -> vector<8x256xf32>
    %31 = vector.broadcast %0 : vector<1x256xf32> to vector<8x256xf32>
    %32 = arith.mulf %30, %31 : vector<8x256xf32>
    %c16_i32 = arith.constant 16 : i32
    %33 = tpu.dynamic_rotate %29 by %c16_i32 dim 1 : vector<8x256xf32>, i32 -> vector<8x256xf32>
    %34 = vector.broadcast %1 : vector<1x256xf32> to vector<8x256xf32>
    %35 = arith.mulf %33, %34 : vector<8x256xf32>
    %c15_i32 = arith.constant 15 : i32
    %36 = tpu.dynamic_rotate %29 by %c15_i32 dim 1 : vector<8x256xf32>, i32 -> vector<8x256xf32>
    %37 = vector.broadcast %2 : vector<1x256xf32> to vector<8x256xf32>
    %38 = arith.mulf %36, %37 : vector<8x256xf32>
    %c1_i32 = arith.constant 1 : i32
    %39 = tpu.dynamic_rotate %29 by %c1_i32 dim 1 : vector<8x256xf32>, i32 -> vector<8x256xf32>
    %40 = vector.broadcast %3 : vector<1x256xf32> to vector<8x256xf32>
    %41 = arith.mulf %39, %40 : vector<8x256xf32>
    %42 = vector.broadcast %4 : vector<1x256xf32> to vector<8x256xf32>
    %43 = arith.mulf %29, %42 : vector<8x256xf32>
    %c255_i32 = arith.constant 255 : i32
    %44 = tpu.dynamic_rotate %29 by %c255_i32 dim 1 : vector<8x256xf32>, i32 -> vector<8x256xf32>
    %45 = vector.broadcast %5 : vector<1x256xf32> to vector<8x256xf32>
    %46 = arith.mulf %44, %45 : vector<8x256xf32>
    %c241_i32 = arith.constant 241 : i32
    %47 = tpu.dynamic_rotate %29 by %c241_i32 dim 1 : vector<8x256xf32>, i32 -> vector<8x256xf32>
    %48 = vector.broadcast %6 : vector<1x256xf32> to vector<8x256xf32>
    %49 = arith.mulf %47, %48 : vector<8x256xf32>
    %c240_i32 = arith.constant 240 : i32
    %50 = tpu.dynamic_rotate %29 by %c240_i32 dim 1 : vector<8x256xf32>, i32 -> vector<8x256xf32>
    %51 = vector.broadcast %7 : vector<1x256xf32> to vector<8x256xf32>
    %52 = arith.mulf %50, %51 : vector<8x256xf32>
    %c239_i32 = arith.constant 239 : i32
    %53 = tpu.dynamic_rotate %29 by %c239_i32 dim 1 : vector<8x256xf32>, i32 -> vector<8x256xf32>
    %54 = vector.broadcast %8 : vector<1x256xf32> to vector<8x256xf32>
    %55 = arith.mulf %53, %54 : vector<8x256xf32>
    %56 = arith.addf %32, %35 : vector<8x256xf32>
    %57 = arith.addf %56, %38 : vector<8x256xf32>
    %cst = arith.constant 0.866025388 : f32
    %58 = vector.broadcast %cst : f32 to vector<8x256xf32>
    %59 = arith.mulf %58, %32 : vector<8x256xf32>
    %cst_41 = arith.constant -0.866025388 : f32
    %60 = vector.broadcast %cst_41 : f32 to vector<8x256xf32>
    %61 = arith.mulf %60, %38 : vector<8x256xf32>
    %62 = arith.addf %59, %61 : vector<8x256xf32>
    %cst_42 = arith.constant 5.000000e-01 : f32
    %63 = vector.broadcast %cst_42 : f32 to vector<8x256xf32>
    %64 = arith.mulf %63, %32 : vector<8x256xf32>
    %cst_43 = arith.constant 0.000000e+00 : f32
    %65 = vector.broadcast %cst_43 : f32 to vector<8x256xf32>
    %66 = arith.subf %65, %35 : vector<8x256xf32>
    %67 = arith.addf %64, %66 : vector<8x256xf32>
    %cst_44 = arith.constant 5.000000e-01 : f32
    %68 = vector.broadcast %cst_44 : f32 to vector<8x256xf32>
    %69 = arith.mulf %68, %38 : vector<8x256xf32>
    %70 = arith.addf %67, %69 : vector<8x256xf32>
    %71 = arith.addf %41, %43 : vector<8x256xf32>
    %72 = arith.addf %71, %46 : vector<8x256xf32>
    %cst_45 = arith.constant 0.866025388 : f32
    %73 = vector.broadcast %cst_45 : f32 to vector<8x256xf32>
    %74 = arith.mulf %73, %41 : vector<8x256xf32>
    %cst_46 = arith.constant -0.866025388 : f32
    %75 = vector.broadcast %cst_46 : f32 to vector<8x256xf32>
    %76 = arith.mulf %75, %46 : vector<8x256xf32>
    %77 = arith.addf %74, %76 : vector<8x256xf32>
    %cst_47 = arith.constant 5.000000e-01 : f32
    %78 = vector.broadcast %cst_47 : f32 to vector<8x256xf32>
    %79 = arith.mulf %78, %41 : vector<8x256xf32>
    %cst_48 = arith.constant 0.000000e+00 : f32
    %80 = vector.broadcast %cst_48 : f32 to vector<8x256xf32>
    %81 = arith.subf %80, %43 : vector<8x256xf32>
    %82 = arith.addf %79, %81 : vector<8x256xf32>
    %cst_49 = arith.constant 5.000000e-01 : f32
    %83 = vector.broadcast %cst_49 : f32 to vector<8x256xf32>
    %84 = arith.mulf %83, %46 : vector<8x256xf32>
    %85 = arith.addf %82, %84 : vector<8x256xf32>
    %86 = arith.addf %49, %52 : vector<8x256xf32>
    %87 = arith.addf %86, %55 : vector<8x256xf32>
    %cst_50 = arith.constant 0.866025388 : f32
    %88 = vector.broadcast %cst_50 : f32 to vector<8x256xf32>
    %89 = arith.mulf %88, %49 : vector<8x256xf32>
    %cst_51 = arith.constant -0.866025388 : f32
    %90 = vector.broadcast %cst_51 : f32 to vector<8x256xf32>
    %91 = arith.mulf %90, %55 : vector<8x256xf32>
    %92 = arith.addf %89, %91 : vector<8x256xf32>
    %cst_52 = arith.constant 5.000000e-01 : f32
    %93 = vector.broadcast %cst_52 : f32 to vector<8x256xf32>
    %94 = arith.mulf %93, %49 : vector<8x256xf32>
    %cst_53 = arith.constant 0.000000e+00 : f32
    %95 = vector.broadcast %cst_53 : f32 to vector<8x256xf32>
    %96 = arith.subf %95, %52 : vector<8x256xf32>
    %97 = arith.addf %94, %96 : vector<8x256xf32>
    %cst_54 = arith.constant 5.000000e-01 : f32
    %98 = vector.broadcast %cst_54 : f32 to vector<8x256xf32>
    %99 = arith.mulf %98, %55 : vector<8x256xf32>
    %100 = arith.addf %97, %99 : vector<8x256xf32>
    %101 = arith.addf %57, %72 : vector<8x256xf32>
    %102 = arith.addf %101, %87 : vector<8x256xf32>
    %103 = vector.broadcast %9 : vector<8x1xf32> to vector<8x256xf32>
    %104 = arith.mulf %102, %103 : vector<8x256xf32>
    %105 = vector.broadcast %18 : vector<8x1xf32> to vector<8x256xf32>
    %106 = arith.addf %104, %105 : vector<8x256xf32>
    %cst_55 = arith.constant 0.000000e+00 : f32
    %107 = vector.broadcast %cst_55 : f32 to vector<8x256xf32>
    %108 = arith.maximumf %106, %107 : vector<8x256xf32>
    %c0_56 = arith.constant 0 : index
    %c0_57 = arith.constant 0 : index
    %109 = vector.load %arg8[%c0_56, %c0_57] : memref<80x256xf32, #tpu.memory_space<vmem>>, vector<8x256xf32>
    tpu.vector_store %arg8[%c0_56, %c0_57], %108 {strides = array<i32>} : memref<80x256xf32, #tpu.memory_space<vmem>>, vector<8x256xf32>,
    %110 = arith.addf %62, %77 : vector<8x256xf32>
    %111 = arith.addf %110, %92 : vector<8x256xf32>
    %112 = vector.broadcast %10 : vector<8x1xf32> to vector<8x256xf32>
    %113 = arith.mulf %111, %112 : vector<8x256xf32>
    %114 = vector.broadcast %19 : vector<8x1xf32> to vector<8x256xf32>
    %115 = arith.addf %113, %114 : vector<8x256xf32>
    %cst_58 = arith.constant 0.000000e+00 : f32
    %116 = vector.broadcast %cst_58 : f32 to vector<8x256xf32>
    %117 = arith.maximumf %115, %116 : vector<8x256xf32>
    %c8_59 = arith.constant 8 : index
    %c0_60 = arith.constant 0 : index
    %118 = vector.load %arg8[%c8_59, %c0_60] : memref<80x256xf32, #tpu.memory_space<vmem>>, vector<8x256xf32>
    tpu.vector_store %arg8[%c8_59, %c0_60], %117 {strides = array<i32>} : memref<80x256xf32, #tpu.memory_space<vmem>>, vector<8x256xf32>,
    %119 = arith.addf %70, %85 : vector<8x256xf32>
    %120 = arith.addf %119, %100 : vector<8x256xf32>
    %121 = vector.broadcast %11 : vector<8x1xf32> to vector<8x256xf32>
    %122 = arith.mulf %120, %121 : vector<8x256xf32>
    %123 = vector.broadcast %20 : vector<8x1xf32> to vector<8x256xf32>
    %124 = arith.addf %122, %123 : vector<8x256xf32>
    %cst_61 = arith.constant 0.000000e+00 : f32
    %125 = vector.broadcast %cst_61 : f32 to vector<8x256xf32>
    %126 = arith.maximumf %124, %125 : vector<8x256xf32>
    %c16_62 = arith.constant 16 : index
    %c0_63 = arith.constant 0 : index
    %127 = vector.load %arg8[%c16_62, %c0_63] : memref<80x256xf32, #tpu.memory_space<vmem>>, vector<8x256xf32>
    tpu.vector_store %arg8[%c16_62, %c0_63], %126 {strides = array<i32>} : memref<80x256xf32, #tpu.memory_space<vmem>>, vector<8x256xf32>,
    %cst_64 = arith.constant 0.866025388 : f32
    %128 = vector.broadcast %cst_64 : f32 to vector<8x256xf32>
    %129 = arith.mulf %128, %57 : vector<8x256xf32>
    %cst_65 = arith.constant -0.866025388 : f32
    %130 = vector.broadcast %cst_65 : f32 to vector<8x256xf32>
    %131 = arith.mulf %130, %87 : vector<8x256xf32>
    %132 = arith.addf %129, %131 : vector<8x256xf32>
    %133 = vector.broadcast %12 : vector<8x1xf32> to vector<8x256xf32>
    %134 = arith.mulf %132, %133 : vector<8x256xf32>
    %135 = vector.broadcast %21 : vector<8x1xf32> to vector<8x256xf32>
    %136 = arith.addf %134, %135 : vector<8x256xf32>
    %cst_66 = arith.constant 0.000000e+00 : f32
    %137 = vector.broadcast %cst_66 : f32 to vector<8x256xf32>
    %138 = arith.maximumf %136, %137 : vector<8x256xf32>
    %c24_67 = arith.constant 24 : index
    %c0_68 = arith.constant 0 : index
    %139 = vector.load %arg8[%c24_67, %c0_68] : memref<80x256xf32, #tpu.memory_space<vmem>>, vector<8x256xf32>
    tpu.vector_store %arg8[%c24_67, %c0_68], %138 {strides = array<i32>} : memref<80x256xf32, #tpu.memory_space<vmem>>, vector<8x256xf32>,
    %cst_69 = arith.constant 0.866025388 : f32
    %140 = vector.broadcast %cst_69 : f32 to vector<8x256xf32>
    %141 = arith.mulf %140, %62 : vector<8x256xf32>
    %cst_70 = arith.constant -0.866025388 : f32
    %142 = vector.broadcast %cst_70 : f32 to vector<8x256xf32>
    %143 = arith.mulf %142, %92 : vector<8x256xf32>
    %144 = arith.addf %141, %143 : vector<8x256xf32>
    %145 = vector.broadcast %13 : vector<8x1xf32> to vector<8x256xf32>
    %146 = arith.mulf %144, %145 : vector<8x256xf32>
    %147 = vector.broadcast %22 : vector<8x1xf32> to vector<8x256xf32>
    %148 = arith.addf %146, %147 : vector<8x256xf32>
    %cst_71 = arith.constant 0.000000e+00 : f32
    %149 = vector.broadcast %cst_71 : f32 to vector<8x256xf32>
    %150 = arith.maximumf %148, %149 : vector<8x256xf32>
    %c32_72 = arith.constant 32 : index
    %c0_73 = arith.constant 0 : index
    %151 = vector.load %arg8[%c32_72, %c0_73] : memref<80x256xf32, #tpu.memory_space<vmem>>, vector<8x256xf32>
    tpu.vector_store %arg8[%c32_72, %c0_73], %150 {strides = array<i32>} : memref<80x256xf32, #tpu.memory_space<vmem>>, vector<8x256xf32>,
    %cst_74 = arith.constant 0.866025388 : f32
    %152 = vector.broadcast %cst_74 : f32 to vector<8x256xf32>
    %153 = arith.mulf %152, %70 : vector<8x256xf32>
    %cst_75 = arith.constant -0.866025388 : f32
    %154 = vector.broadcast %cst_75 : f32 to vector<8x256xf32>
    %155 = arith.mulf %154, %100 : vector<8x256xf32>
    %156 = arith.addf %153, %155 : vector<8x256xf32>
    %157 = vector.broadcast %14 : vector<8x1xf32> to vector<8x256xf32>
    %158 = arith.mulf %156, %157 : vector<8x256xf32>
    %159 = vector.broadcast %23 : vector<8x1xf32> to vector<8x256xf32>
    %160 = arith.addf %158, %159 : vector<8x256xf32>
    %cst_76 = arith.constant 0.000000e+00 : f32
    %161 = vector.broadcast %cst_76 : f32 to vector<8x256xf32>
    %162 = arith.maximumf %160, %161 : vector<8x256xf32>
    %c40_77 = arith.constant 40 : index
    %c0_78 = arith.constant 0 : index
    %163 = vector.load %arg8[%c40_77, %c0_78] : memref<80x256xf32, #tpu.memory_space<vmem>>, vector<8x256xf32>
    tpu.vector_store %arg8[%c40_77, %c0_78], %162 {strides = array<i32>} : memref<80x256xf32, #tpu.memory_space<vmem>>, vector<8x256xf32>,
    %cst_79 = arith.constant 5.000000e-01 : f32
    %164 = vector.broadcast %cst_79 : f32 to vector<8x256xf32>
    %165 = arith.mulf %164, %57 : vector<8x256xf32>
    %cst_80 = arith.constant 0.000000e+00 : f32
    %166 = vector.broadcast %cst_80 : f32 to vector<8x256xf32>
    %167 = arith.subf %166, %72 : vector<8x256xf32>
    %168 = arith.addf %165, %167 : vector<8x256xf32>
    %cst_81 = arith.constant 5.000000e-01 : f32
    %169 = vector.broadcast %cst_81 : f32 to vector<8x256xf32>
    %170 = arith.mulf %169, %87 : vector<8x256xf32>
    %171 = arith.addf %168, %170 : vector<8x256xf32>
    %172 = vector.broadcast %15 : vector<8x1xf32> to vector<8x256xf32>
    %173 = arith.mulf %171, %172 : vector<8x256xf32>
    %174 = vector.broadcast %24 : vector<8x1xf32> to vector<8x256xf32>
    %175 = arith.addf %173, %174 : vector<8x256xf32>
    %cst_82 = arith.constant 0.000000e+00 : f32
    %176 = vector.broadcast %cst_82 : f32 to vector<8x256xf32>
    %177 = arith.maximumf %175, %176 : vector<8x256xf32>
    %c48_83 = arith.constant 48 : index
    %c0_84 = arith.constant 0 : index
    %178 = vector.load %arg8[%c48_83, %c0_84] : memref<80x256xf32, #tpu.memory_space<vmem>>, vector<8x256xf32>
    tpu.vector_store %arg8[%c48_83, %c0_84], %177 {strides = array<i32>} : memref<80x256xf32, #tpu.memory_space<vmem>>, vector<8x256xf32>,
    %cst_85 = arith.constant 5.000000e-01 : f32
    %179 = vector.broadcast %cst_85 : f32 to vector<8x256xf32>
    %180 = arith.mulf %179, %62 : vector<8x256xf32>
    %cst_86 = arith.constant 0.000000e+00 : f32
    %181 = vector.broadcast %cst_86 : f32 to vector<8x256xf32>
    %182 = arith.subf %181, %77 : vector<8x256xf32>
    %183 = arith.addf %180, %182 : vector<8x256xf32>
    %cst_87 = arith.constant 5.000000e-01 : f32
    %184 = vector.broadcast %cst_87 : f32 to vector<8x256xf32>
    %185 = arith.mulf %184, %92 : vector<8x256xf32>
    %186 = arith.addf %183, %185 : vector<8x256xf32>
    %187 = vector.broadcast %16 : vector<8x1xf32> to vector<8x256xf32>
    %188 = arith.mulf %186, %187 : vector<8x256xf32>
    %189 = vector.broadcast %25 : vector<8x1xf32> to vector<8x256xf32>
    %190 = arith.addf %188, %189 : vector<8x256xf32>
    %cst_88 = arith.constant 0.000000e+00 : f32
    %191 = vector.broadcast %cst_88 : f32 to vector<8x256xf32>
    %192 = arith.maximumf %190, %191 : vector<8x256xf32>
    %c56_89 = arith.constant 56 : index
    %c0_90 = arith.constant 0 : index
    %193 = vector.load %arg8[%c56_89, %c0_90] : memref<80x256xf32, #tpu.memory_space<vmem>>, vector<8x256xf32>
    tpu.vector_store %arg8[%c56_89, %c0_90], %192 {strides = array<i32>} : memref<80x256xf32, #tpu.memory_space<vmem>>, vector<8x256xf32>,
    %cst_91 = arith.constant 5.000000e-01 : f32
    %194 = vector.broadcast %cst_91 : f32 to vector<8x256xf32>
    %195 = arith.mulf %194, %70 : vector<8x256xf32>
    %cst_92 = arith.constant 0.000000e+00 : f32
    %196 = vector.broadcast %cst_92 : f32 to vector<8x256xf32>
    %197 = arith.subf %196, %85 : vector<8x256xf32>
    %198 = arith.addf %195, %197 : vector<8x256xf32>
    %cst_93 = arith.constant 5.000000e-01 : f32
    %199 = vector.broadcast %cst_93 : f32 to vector<8x256xf32>
    %200 = arith.mulf %199, %100 : vector<8x256xf32>
    %201 = arith.addf %198, %200 : vector<8x256xf32>
    %202 = vector.broadcast %17 : vector<8x1xf32> to vector<8x256xf32>
    %203 = arith.mulf %201, %202 : vector<8x256xf32>
    %204 = vector.broadcast %26 : vector<8x1xf32> to vector<8x256xf32>
    %205 = arith.addf %203, %204 : vector<8x256xf32>
    %cst_94 = arith.constant 0.000000e+00 : f32
    %206 = vector.broadcast %cst_94 : f32 to vector<8x256xf32>
    %207 = arith.maximumf %205, %206 : vector<8x256xf32>
    %c64_95 = arith.constant 64 : index
    %c0_96 = arith.constant 0 : index
    %208 = vector.load %arg8[%c64_95, %c0_96] : memref<80x256xf32, #tpu.memory_space<vmem>>, vector<8x256xf32>
    tpu.vector_store %arg8[%c64_95, %c0_96], %207 {strides = array<i32>} : memref<80x256xf32, #tpu.memory_space<vmem>>, vector<8x256xf32>,
    %c72 = arith.constant 72 : index
    %c0_97 = arith.constant 0 : index
    %209 = vector.load %arg8[%c72, %c0_97] : memref<80x256xf32, #tpu.memory_space<vmem>>, vector<8x256xf32>
    tpu.vector_store %arg8[%c72, %c0_97], %29 {strides = array<i32>} : memref<80x256xf32, #tpu.memory_space<vmem>>, vector<8x256xf32>,
    %c0_98 = arith.constant 0 : index
    %c0_99 = arith.constant 0 : index
    %210 = vector.load %arg5[%c0_98, %c0_99] : memref<8x80xbf16, #tpu.memory_space<vmem>>, vector<8x80xbf16>
    %c0_100 = arith.constant 0 : index
    %c0_101 = arith.constant 0 : index
    %211 = vector.load %arg8[%c0_100, %c0_101] : memref<80x256xf32, #tpu.memory_space<vmem>>, vector<80x256xf32>
    %212 = arith.truncf %211 : vector<80x256xf32> to vector<80x256xbf16>
    %cst_102 = arith.constant dense<0.000000e+00> : vector<8x256xf32>
    %213 = tpu.matmul %210, %212, %cst_102 {dimension_numbers = #tpu.dot_dimension_numbers<[1], [0], [0], [1], [0, 0, 1, 1], [], []>} : vector<8x80xbf16>, vector<80x256xbf16>, vector<8x256xf32> -> vector<8x256xf32>
    %c0_103 = arith.constant 0 : index
    %c0_104 = arith.constant 0 : index
    %214 = vector.load %arg6[%c0_103, %c0_104] : memref<8x1xf32, #tpu.memory_space<vmem>>, vector<8x1xf32>
    %215 = vector.broadcast %214 : vector<8x1xf32> to vector<8x256xf32>
    %216 = arith.addf %213, %215 : vector<8x256xf32>
    %cst_105 = arith.constant 0.000000e+00 : f32
    %217 = vector.broadcast %cst_105 : f32 to vector<8x256xf32>
    %218 = arith.maximumf %216, %217 : vector<8x256xf32>
    %c0_106 = arith.constant 0 : index
    %c0_107 = arith.constant 0 : index
    %c0_108 = arith.constant 0 : index
    %219 = vector.load %arg7[%c0_106, %c0_107, %c0_108] : memref<1x8x256xf32, #tpu.memory_space<vmem>>, vector<1x8x256xf32>
    %220 = vector.shape_cast %219 : vector<1x8x256xf32> to vector<8x256xf32>
    %221 = vector.shape_cast %218 : vector<8x256xf32> to vector<1x8x256xf32>
    tpu.vector_store %arg7[%c0_106, %c0_107, %c0_108], %221 {strides = array<i32>} : memref<1x8x256xf32, #tpu.memory_space<vmem>>, vector<1x8x256xf32>,
    return
  }
  func.func @transform_0(%arg0: i32) -> (i32, i32, i32) {
    %c0_i32 = arith.constant 0 : i32
    %c0_i32_0 = arith.constant 0 : i32
    %c0_i32_1 = arith.constant 0 : i32
    return %arg0, %c0_i32, %c0_i32_0 : i32, i32, i32
  }
  func.func @transform_1(%arg0: i32) -> (i32, i32) {
    %c0_i32 = arith.constant 0 : i32
    %c0_i32_0 = arith.constant 0 : i32
    %c0_i32_1 = arith.constant 0 : i32
    return %c0_i32, %c0_i32_0 : i32, i32
  }
  func.func @transform_2(%arg0: i32) -> (i32, i32) {
    %c0_i32 = arith.constant 0 : i32
    %c0_i32_0 = arith.constant 0 : i32
    %c0_i32_1 = arith.constant 0 : i32
    return %c0_i32, %c0_i32_0 : i32, i32
  }
  func.func @transform_3(%arg0: i32) -> (i32, i32) {
    %c0_i32 = arith.constant 0 : i32
    %c0_i32_0 = arith.constant 0 : i32
    %c0_i32_1 = arith.constant 0 : i32
    return %c0_i32, %c0_i32_0 : i32, i32
  }
  func.func @transform_4(%arg0: i32) -> (i32, i32) {
    %c0_i32 = arith.constant 0 : i32
    %c0_i32_0 = arith.constant 0 : i32
    %c0_i32_1 = arith.constant 0 : i32
    return %c0_i32, %c0_i32_0 : i32, i32
  }
  func.func @transform_5(%arg0: i32) -> (i32, i32) {
    %c0_i32 = arith.constant 0 : i32
    %c0_i32_0 = arith.constant 0 : i32
    %c0_i32_1 = arith.constant 0 : i32
    return %c0_i32, %c0_i32_0 : i32, i32
  }
  func.func @transform_6(%arg0: i32) -> (i32, i32, i32) {
    %c0_i32 = arith.constant 0 : i32
    %c0_i32_0 = arith.constant 0 : i32
    %c0_i32_1 = arith.constant 0 : i32
    return %arg0, %c0_i32, %c0_i32_0 : i32, i32, i32
  }
}

</mosaic_0001>

<llo_original>
// kernel: harmonic_block_forward.1
$region0: #{harmonic_block_forward.1}
  #allocation0 [shape = 'u32[]', space=smem, size = 0x4, offset = 0x4, fixed_abs, tag = 'smem constant byte address 0x4 - core index']
  #allocation1 [shape = 'u32[144,128]{1,0:T(1,128)}', space=vmem, size = 0x12000, scoped, tag = 'internal scratch']
  #allocation2 [shape = 'f32[80,256]{1,0:T(8,128)}', space=vmem, size = 0x14000, scoped, tag = 'scratch operand']
  %s0 = inlined_call_operand.vmem [shape: bf16[2,8,256], index: 0, kind: input, shape index: {}]
  %s1 = inlined_call_operand.vmem [shape: f32[9,256], index: 1, kind: input, shape index: {}]
  %s2 = inlined_call_operand.vmem [shape: f32[72,1], index: 2, kind: input, shape index: {}]
  %s3 = inlined_call_operand.vmem [shape: f32[72,1], index: 3, kind: input, shape index: {}]
  %s4 = inlined_call_operand.vmem [shape: bf16[8,80], index: 4, kind: input, shape index: {}]
  %s5 = inlined_call_operand.vmem [shape: f32[8,1], index: 5, kind: input, shape index: {}]
  %s6 = inlined_call_operand.vmem [shape: f32[2,8,256], index: 6, kind: output, shape index: {}]
  %s7 = sld [smem:[#allocation0]]
  $region57: #{harmonic_block_forward.1} parent=0
    _
  %s9 = ssub.s32 1, %s7
  %s10 = scalar_select 0, %s9, %s7
  loop: start=0, step=1, limit=4
  $region2: #{harmonic_block_forward.1} parent=0 // loop_pre_header
    _
  $region3: #{harmonic_block_forward.1} parent=0 // loop_header
    %s12 = sphi 0, %s16
    %p13 = scmp.ge.s32.totalorder %s12, 4
    %s22 = sphi 0, %s24
    %s25 = sphi 0, %s22
    %s26 = sphi 0, %s25
    %s42 = sphi 0, %s26
    %s46 = sphi 0, %s46
    %s48 = sphi 0, %s46
    %s49 = sphi 0, %s48
    %s63 = sphi 0, %s49
    %s67 = sphi 0, %s67
    %s69 = sphi 0, %s67
    %s70 = sphi 0, %s69
    %s84 = sphi 0, %s70
    %s88 = sphi 0, %s88
    %s90 = sphi 0, %s88
    %s91 = sphi 0, %s90
    %s105 = sphi 0, %s91
    %s109 = sphi 0, %s109
    %s111 = sphi 0, %s109
    %s112 = sphi 0, %s111
    %s126 = sphi 0, %s112
    %s130 = sphi 0, %s130
    %s132 = sphi 0, %s130
    %s133 = sphi 0, %s132
    %s147 = sphi 0, %s133
    %s153 = sphi 0, %s155
    %s156 = sphi 0, %s153
    %s157 = sphi 0, %s156
    %s173 = sphi 0, %s157
  $region4: #{harmonic_block_forward.1} parent=0 // loop_header_branch
    %15 = sbr.rel (%p13) target = $region8
  $region5: #{harmonic_block_forward.1} parent=0 // loop_body
    %s17 = ssub.s32 %s12, 1
    %s18 = ssub.s32 %s12, 2
    %s19 = sadd.s32 %s12, 1
    %s20 = ssub.s32 %s12, %s19
    %p21 = scmp.eq.s32.totalorder %s20, 0
    %s23 = sadd.s32 %s22, 1
    %s24 = scalar_select %p21, %s22, %s23
    %p27 = pneg %p21
    %p28 = scmp.eq.s32.totalorder %s12, 1
    %p29 = por %p27, %p28
    %p30 = scmp.ne.s32.totalorder %s22, %s25
    %p31 = scmp.eq.s32.totalorder %s12, 0
    %p32 = por %p30, %p31
    %p33 = scmp.ne.s32.totalorder %s22, %s25
    %p34 = scmp.eq.s32.totalorder %s17, 1
    %p35 = por %p33, %p34
    %p36 = scmp.ne.s32.totalorder %s25, %s26
    %p37 = scmp.eq.s32.totalorder %s17, 0
    %p38 = por %p36, %p37
    %p39 = scmp.ne.s32.totalorder %s25, %s26
    %p40 = scmp.eq.s32.totalorder %s18, 1
    %p41 = por %p39, %p40
    %p43 = scmp.ne.s32.totalorder %s26, %s42
    %p44 = scmp.eq.s32.totalorder %s18, 0
    %p45 = por %p43, %p44
    %s47 = sadd.s32 %s46, 1
    %p50 = scmp.eq.s32.totalorder %s12, 1
    %p51 = scmp.ne.s32.totalorder %s46, %s48
    %p52 = scmp.eq.s32.totalorder %s12, 0
    %p53 = por %p51, %p52
    %p54 = scmp.ne.s32.totalorder %s46, %s48
    %p55 = scmp.eq.s32.totalorder %s17, 1
    %p56 = por %p54, %p55
    %p57 = scmp.ne.s32.totalorder %s48, %s49
    %p58 = scmp.eq.s32.totalorder %s17, 0
    %p59 = por %p57, %p58
    %p60 = scmp.ne.s32.totalorder %s48, %s49
    %p61 = scmp.eq.s32.totalorder %s18, 1
    %p62 = por %p60, %p61
    %p64 = scmp.ne.s32.totalorder %s49, %s63
    %p65 = scmp.eq.s32.totalorder %s18, 0
    %p66 = por %p64, %p65
    %s68 = sadd.s32 %s67, 1
    %p71 = scmp.eq.s32.totalorder %s12, 1
    %p72 = scmp.ne.s32.totalorder %s67, %s69
    %p73 = scmp.eq.s32.totalorder %s12, 0
    %p74 = por %p72, %p73
    %p75 = scmp.ne.s32.totalorder %s67, %s69
    %p76 = scmp.eq.s32.totalorder %s17, 1
    %p77 = por %p75, %p76
    %p78 = scmp.ne.s32.totalorder %s69, %s70
    %p79 = scmp.eq.s32.totalorder %s17, 0
    %p80 = por %p78, %p79
    %p81 = scmp.ne.s32.totalorder %s69, %s70
    %p82 = scmp.eq.s32.totalorder %s18, 1
    %p83 = por %p81, %p82
    %p85 = scmp.ne.s32.totalorder %s70, %s84
    %p86 = scmp.eq.s32.totalorder %s18, 0
    %p87 = por %p85, %p86
    %s89 = sadd.s32 %s88, 1
    %p92 = scmp.eq.s32.totalorder %s12, 1
    %p93 = scmp.ne.s32.totalorder %s88, %s90
    %p94 = scmp.eq.s32.totalorder %s12, 0
    %p95 = por %p93, %p94
    %p96 = scmp.ne.s32.totalorder %s88, %s90
    %p97 = scmp.eq.s32.totalorder %s17, 1
    %p98 = por %p96, %p97
    %p99 = scmp.ne.s32.totalorder %s90, %s91
    %p100 = scmp.eq.s32.totalorder %s17, 0
    %p101 = por %p99, %p100
    %p102 = scmp.ne.s32.totalorder %s90, %s91
    %p103 = scmp.eq.s32.totalorder %s18, 1
    %p104 = por %p102, %p103
    %p106 = scmp.ne.s32.totalorder %s91, %s105
    %p107 = scmp.eq.s32.totalorder %s18, 0
    %p108 = por %p106, %p107
    %s110 = sadd.s32 %s109, 1
    %p113 = scmp.eq.s32.totalorder %s12, 1
    %p114 = scmp.ne.s32.totalorder %s109, %s111
    %p115 = scmp.eq.s32.totalorder %s12, 0
    %p116 = por %p114, %p115
    %p117 = scmp.ne.s32.totalorder %s109, %s111
    %p118 = scmp.eq.s32.totalorder %s17, 1
    %p119 = por %p117, %p118
    %p120 = scmp.ne.s32.totalorder %s111, %s112
    %p121 = scmp.eq.s32.totalorder %s17, 0
    %p122 = por %p120, %p121
    %p123 = scmp.ne.s32.totalorder %s111, %s112
    %p124 = scmp.eq.s32.totalorder %s18, 1
    %p125 = por %p123, %p124
    %p127 = scmp.ne.s32.totalorder %s112, %s126
    %p128 = scmp.eq.s32.totalorder %s18, 0
    %p129 = por %p127, %p128
    %s131 = sadd.s32 %s130, 1
    %p134 = scmp.eq.s32.totalorder %s12, 1
    %p135 = scmp.ne.s32.totalorder %s130, %s132
    %p136 = scmp.eq.s32.totalorder %s12, 0
    %p137 = por %p135, %p136
    %p138 = scmp.ne.s32.totalorder %s130, %s132
    %p139 = scmp.eq.s32.totalorder %s17, 1
    %p140 = por %p138, %p139
    %p141 = scmp.ne.s32.totalorder %s132, %s133
    %p142 = scmp.eq.s32.totalorder %s17, 0
    %p143 = por %p141, %p142
    %p144 = scmp.ne.s32.totalorder %s132, %s133
    %p145 = scmp.eq.s32.totalorder %s18, 1
    %p146 = por %p144, %p145
    %p148 = scmp.ne.s32.totalorder %s133, %s147
    %p149 = scmp.eq.s32.totalorder %s18, 0
    %p150 = por %p148, %p149
    %s151 = ssub.s32 %s12, %s19
    %p152 = scmp.eq.s32.totalorder %s151, 0
    %s154 = sadd.s32 %s153, 1
    %s155 = scalar_select %p152, %s153, %s154
    %p158 = pneg %p152
    %p159 = scmp.eq.s32.totalorder %s12, 1
    %p160 = por %p158, %p159
    %p161 = scmp.ne.s32.totalorder %s153, %s156
    %p162 = scmp.eq.s32.totalorder %s12, 0
    %p163 = por %p161, %p162
    %p164 = scmp.ne.s32.totalorder %s153, %s156
    %p165 = scmp.eq.s32.totalorder %s17, 1
    %p166 = por %p164, %p165
    %p167 = scmp.ne.s32.totalorder %s156, %s157
    %p168 = scmp.eq.s32.totalorder %s17, 0
    %p169 = por %p167, %p168
    %p170 = scmp.ne.s32.totalorder %s156, %s157
    %p171 = scmp.eq.s32.totalorder %s18, 1
    %p172 = por %p170, %p171
    %p174 = scmp.ne.s32.totalorder %s157, %s173
    %p175 = scmp.eq.s32.totalorder %s18, 0
    %p176 = por %p174, %p175
    %p177 = scmp.le.s32.totalorder 1, %s12
    %p178 = scmp.lt.s32.totalorder %s12, 3
    %p179 = pnand %p177, %p178
    %p180 = pneg %p179
    // Predicated region
    $region9: #{harmonic_block_forward.1} parent=5 // pred_check
      _
    $region10: #{harmonic_block_forward.1} parent=5 // pred_check_branch
      %182 = sbr.rel (%p179) target = $region12
    $region11: #{harmonic_block_forward.1} parent=5 // pred_region
      %s183 = ssub.s32 %s12, 1
      // Predicated region
      $region13: #{harmonic_block_forward.1} parent=11 // pred_check
        %p184 = pneg %p59
      $region14: #{harmonic_block_forward.1} parent=11 // pred_check_branch
        %186 = sbr.rel (%p184) target = $region16
      $region15: #{harmonic_block_forward.1} parent=11 // pred_region
        _
      $region16: #{harmonic_block_forward.1} parent=11 // pred_fallthru
        _
      // Predicated region
      $region17: #{harmonic_block_forward.1} parent=11 // pred_check
        %p187 = pneg %p80
      $region18: #{harmonic_block_forward.1} parent=11 // pred_check_branch
        %189 = sbr.rel (%p187) target = $region20
      $region19: #{harmonic_block_forward.1} parent=11 // pred_region
        _
      $region20: #{harmonic_block_forward.1} parent=11 // pred_fallthru
        _
      // Predicated region
      $region21: #{harmonic_block_forward.1} parent=11 // pred_check
        %p190 = pneg %p101
      $region22: #{harmonic_block_forward.1} parent=11 // pred_check_branch
        %192 = sbr.rel (%p190) target = $region24
      $region23: #{harmonic_block_forward.1} parent=11 // pred_region
        _
      $region24: #{harmonic_block_forward.1} parent=11 // pred_fallthru
        _
      // Predicated region
      $region25: #{harmonic_block_forward.1} parent=11 // pred_check
        %p193 = pneg %p122
      $region26: #{harmonic_block_forward.1} parent=11 // pred_check_branch
        %195 = sbr.rel (%p193) target = $region28
      $region27: #{harmonic_block_forward.1} parent=11 // pred_region
        _
      $region28: #{harmonic_block_forward.1} parent=11 // pred_fallthru
        _
      // Predicated region
      $region29: #{harmonic_block_forward.1} parent=11 // pred_check
        %p196 = pneg %p143
      $region30: #{harmonic_block_forward.1} parent=11 // pred_check_branch
        %198 = sbr.rel (%p196) target = $region32
      $region31: #{harmonic_block_forward.1} parent=11 // pred_region
        _
      $region32: #{harmonic_block_forward.1} parent=11 // pred_fallthru
        _
    $region12: #{harmonic_block_forward.1} parent=5 // pred_fallthru
      _
    %p199 = scmp.lt.s32.totalorder %s12, 2
    // Predicated region
    $region33: #{harmonic_block_forward.1} parent=5 // pred_check
      %p200 = pneg %p199
    $region34: #{harmonic_block_forward.1} parent=5 // pred_check_branch
      %202 = sbr.rel (%p200) target = $region36
    $region35: #{harmonic_block_forward.1} parent=5 // pred_region
      // Predicated region
      $region37: #{harmonic_block_forward.1} parent=35 // pred_check
        %p203 = pneg %p32
      $region38: #{harmonic_block_forward.1} parent=35 // pred_check_branch
        %205 = sbr.rel (%p203) target = $region40
      $region39: #{harmonic_block_forward.1} parent=35 // pred_region
        %p206 = scmp.lt.s32.totalorder %s12, 1
        %s207 = scalar_select %p206, %s12, 1
        %s208 = smul.addr %s207, 2
        %s209 = smul.addr %s208, 4
        %s210 = scalar_lea.vmem %s0, %s209
      $region40: #{harmonic_block_forward.1} parent=35 // pred_fallthru
        _
    $region36: #{harmonic_block_forward.1} parent=5 // pred_fallthru
      _
    %p211 = scmp.le.s32.totalorder 1, %s12
    %p212 = scmp.lt.s32.totalorder %s12, 3
    %p213 = pnand %p211, %p212
    %p214 = pneg %p213
    // Predicated region
    $region41: #{harmonic_block_forward.1} parent=5 // pred_check
      _
    $region42: #{harmonic_block_forward.1} parent=5 // pred_check_branch
      %216 = sbr.rel (%p213) target = $region44
    $region43: #{harmonic_block_forward.1} parent=5 // pred_region
      %s217 = ssub.s32 %s12, 1
      %p218 = scmp.lt.s32.totalorder %s17, 1
      %s219 = scalar_select %p218, %s17, 1
      %s220 = smul.addr %s219, 2
      %s221 = smul.addr %s220, 4
      %s222 = scalar_lea.vmem %s0, %s221
      %p223 = pneg %p38
      %p224 = pneg %p35
      %p225 = pneg %p59
      %p226 = pneg %p56
      %p227 = pneg %p80
      %p228 = pneg %p77
      %p229 = pneg %p101
      %p230 = pneg %p98
      %p231 = pneg %p122
      %p232 = pneg %p119
      %p233 = pneg %p143
      %p234 = pneg %p140
      %p235 = pneg %p169
      %p236 = pneg %p166
      %p237 = scmp.lt.s32.totalorder %s17, 1
      %s238 = scalar_select %p237, %s17, 1
      %s239 = smul.addr %s238, 2
      %s240 = smul.addr %s239, 8
      %s241 = scalar_lea.vmem %s6, %s240
      %p242 = scmp.lt.s32.totalorder %s17, 1
      %s243 = scalar_select %p242, %s17, 1
      %s244 = smul.addr %s243, 2
      %s245 = smul.addr %s244, 4
      %s246 = scalar_lea.vmem %s0, %s245
      %p247 = scmp.lt.s32.totalorder %s17, 1
      %s248 = scalar_select %p247, %s17, 1
      %s249 = smul.addr %s248, 2
      %s250 = smul.addr %s249, 8
      %s251 = scalar_lea.vmem %s6, %s250
      %v253 = vld [vmem:[%s1] ss:$8 sm:$0x3]
      %s254 = scalar_lea.vmem %s1, 1
      %v255 = vld [vmem:[%s254] ss:$8 sm:$0x3]
      %s256 = scalar_lea.vmem %s1, 2
      %v257 = vld [vmem:[%s256] ss:$8 sm:$0x3]
      %s258 = scalar_lea.vmem %s1, 3
      %v259 = vld [vmem:[%s258] ss:$8 sm:$0x3]
      %s260 = scalar_lea.vmem %s1, 4
      %v261 = vld [vmem:[%s260] ss:$8 sm:$0x3]
      %s262 = scalar_lea.vmem %s1, 5
      %v263 = vld [vmem:[%s262] ss:$8 sm:$0x3]
      %s264 = scalar_lea.vmem %s1, 6
      %v265 = vld [vmem:[%s264] ss:$8 sm:$0x3]
      %s266 = scalar_lea.vmem %s1, 7
      %v267 = vld [vmem:[%s266] ss:$8 sm:$0x3]
      %s268 = scalar_lea.vmem %s1, 16
      %v269 = vld [vmem:[%s268] ss:$8 sm:$0x3]
      %v270 = vld [vmem:[%s2] sm:$0xff]
      %v271 = vld [vmem:[%s2 + $0x8] sm:$0xff]
      %v272 = vld [vmem:[%s2 + $0x10] sm:$0xff]
      %v273 = vld [vmem:[%s2 + $0x18] sm:$0xff]
      %v274 = vld [vmem:[%s2 + $0x20] sm:$0xff]
      %v275 = vld [vmem:[%s2 + $0x28] sm:$0xff]
      %v276 = vld [vmem:[%s2 + $0x30] sm:$0xff]
      %v277 = vld [vmem:[%s2 + $0x38] sm:$0xff]
      %v278 = vld [vmem:[%s2 + $0x40] sm:$0xff]
      %v279 = vld [vmem:[%s3] sm:$0xff]
      %v280 = vld [vmem:[%s3 + $0x8] sm:$0xff]
      %v281 = vld [vmem:[%s3 + $0x10] sm:$0xff]
      %v282 = vld [vmem:[%s3 + $0x18] sm:$0xff]
      %v283 = vld [vmem:[%s3 + $0x20] sm:$0xff]
      %v284 = vld [vmem:[%s3 + $0x28] sm:$0xff]
      %v285 = vld [vmem:[%s3 + $0x30] sm:$0xff]
      %v286 = vld [vmem:[%s3 + $0x38] sm:$0xff]
      %v287 = vld [vmem:[%s3 + $0x40] sm:$0xff]
      %v288 = vld [vmem:[%s246] sm:$0xff]
      %v289 = vunpack.c.l.bf16 %v288
      %v290 = vunpack.c.h.bf16 %v288
      %291 = vrot.lane.b32.xlu0 %v289, 17
      %v292 = vpop.permute.xlu0 %291
      %293 = vrot.lane.b32.xlu0 %v290, 17
      %v294 = vpop.permute.xlu0 %293
      %v295 = vlaneseq
      %v296 = vand.u32 %v295, 127
      %vm297 = vcmp.lt.s32.totalorder %v296, 17
      %v298 = vsel %vm297, %v292, %v294
      %v299 = vsel %vm297, %v294, %v292
      %v301 = vlaneseq
      %v302 = vshrl.u32 %v301, 7
      %v303 = vsub.s32 0, %v302
      %v304 = vrot.slane %v253, %v303
      %v305 = vlaneseq
      %v306 = vshrl.u32 %v305, 7
      %v307 = vsub.s32 1, %v306
      %v308 = vrot.slane %v253, %v307
      %v311 = vmul.f32 %v299, %v304
      %v312 = vmul.f32 %v298, %v308
      %313 = vrot.lane.b32.xlu0 %v289, 16
      %v314 = vpop.permute.xlu0 %313
      %315 = vrot.lane.b32.xlu0 %v290, 16
      %v316 = vpop.permute.xlu0 %315
      %vm317 = vcmp.lt.s32.totalorder %v296, 16
      %v318 = vsel %vm317, %v314, %v316
      %v319 = vsel %vm317, %v316, %v314
      %v321 = vlaneseq
      %v322 = vshrl.u32 %v321, 7
      %v323 = vsub.s32 0, %v322
      %v324 = vrot.slane %v255, %v323
      %v325 = vlaneseq
      %v326 = vshrl.u32 %v325, 7
      %v327 = vsub.s32 1, %v326
      %v328 = vrot.slane %v255, %v327
      %v331 = vmul.f32 %v319, %v324
      %v332 = vmul.f32 %v318, %v328
      %333 = vrot.lane.b32.xlu0 %v289, 15
      %v334 = vpop.permute.xlu0 %333
      %335 = vrot.lane.b32.xlu0 %v290, 15
      %v336 = vpop.permute.xlu0 %335
      %vm337 = vcmp.lt.s32.totalorder %v296, 15
      %v338 = vsel %vm337, %v334, %v336
      %v339 = vsel %vm337, %v336, %v334
      %v341 = vlaneseq
      %v342 = vshrl.u32 %v341, 7
      %v343 = vsub.s32 0, %v342
      %v344 = vrot.slane %v257, %v343
      %v345 = vlaneseq
      %v346 = vshrl.u32 %v345, 7
      %v347 = vsub.s32 1, %v346
      %v348 = vrot.slane %v257, %v347
      %v351 = vmul.f32 %v339, %v344
      %v352 = vmul.f32 %v338, %v348
      %353 = vrot.lane.b32.xlu0 %v289, 1
      %v354 = vpop.permute.xlu0 %353
      %355 = vrot.lane.b32.xlu0 %v290, 1
      %v356 = vpop.permute.xlu0 %355
      %vm357 = vcmp.lt.s32.totalorder %v296, 1
      %v358 = vsel %vm357, %v354, %v356
      %v359 = vsel %vm357, %v356, %v354
      %v361 = vlaneseq
      %v362 = vshrl.u32 %v361, 7
      %v363 = vsub.s32 0, %v362
      %v364 = vrot.slane %v259, %v363
      %v365 = vlaneseq
      %v366 = vshrl.u32 %v365, 7
      %v367 = vsub.s32 1, %v366
      %v368 = vrot.slane %v259, %v367
      %v371 = vmul.f32 %v359, %v364
      %v372 = vmul.f32 %v358, %v368
      %v374 = vlaneseq
      %v375 = vshrl.u32 %v374, 7
      %v376 = vsub.s32 0, %v375
      %v377 = vrot.slane %v261, %v376
      %v378 = vlaneseq
      %v379 = vshrl.u32 %v378, 7
      %v380 = vsub.s32 1, %v379
      %v381 = vrot.slane %v261, %v380
      %v384 = vmul.f32 %v289, %v377
      %v385 = vmul.f32 %v290, %v381
      %386 = vrot.lane.b32.xlu0 %v289, 127
      %v387 = vpop.permute.xlu0 %386
      %388 = vrot.lane.b32.xlu0 %v290, 127
      %v389 = vpop.permute.xlu0 %388
      %vm390 = vcmp.lt.s32.totalorder %v296, 127
      %v391 = vsel %vm390, %v387, %v389
      %v392 = vsel %vm390, %v389, %v387
      %v394 = vlaneseq
      %v395 = vshrl.u32 %v394, 7
      %v396 = vsub.s32 0, %v395
      %v397 = vrot.slane %v263, %v396
      %v398 = vlaneseq
      %v399 = vshrl.u32 %v398, 7
      %v400 = vsub.s32 1, %v399
      %v401 = vrot.slane %v263, %v400
      %v404 = vmul.f32 %v391, %v397
      %v405 = vmul.f32 %v392, %v401
      %406 = vrot.lane.b32.xlu0 %v289, 113
      %v407 = vpop.permute.xlu0 %406
      %408 = vrot.lane.b32.xlu0 %v290, 113
      %v409 = vpop.permute.xlu0 %408
      %vm410 = vcmp.lt.s32.totalorder %v296, 113
      %v411 = vsel %vm410, %v407, %v409
      %v412 = vsel %vm410, %v409, %v407
      %v414 = vlaneseq
      %v415 = vshrl.u32 %v414, 7
      %v416 = vsub.s32 0, %v415
      %v417 = vrot.slane %v265, %v416
      %v418 = vlaneseq
      %v419 = vshrl.u32 %v418, 7
      %v420 = vsub.s32 1, %v419
      %v421 = vrot.slane %v265, %v420
      %v424 = vmul.f32 %v411, %v417
      %v425 = vmul.f32 %v412, %v421
      %426 = vrot.lane.b32.xlu0 %v289, 112
      %v427 = vpop.permute.xlu0 %426
      %428 = vrot.lane.b32.xlu0 %v290, 112
      %v429 = vpop.permute.xlu0 %428
      %vm430 = vcmp.lt.s32.totalorder %v296, 112
      %v431 = vsel %vm430, %v427, %v429
      %v432 = vsel %vm430, %v429, %v427
      %v434 = vlaneseq
      %v435 = vshrl.u32 %v434, 7
      %v436 = vsub.s32 0, %v435
      %v437 = vrot.slane %v267, %v436
      %v438 = vlaneseq
      %v439 = vshrl.u32 %v438, 7
      %v440 = vsub.s32 1, %v439
      %v441 = vrot.slane %v267, %v440
      %v444 = vmul.f32 %v431, %v437
      %v445 = vmul.f32 %v432, %v441
      %446 = vrot.lane.b32.xlu0 %v289, 111
      %v447 = vpop.permute.xlu0 %446
      %448 = vrot.lane.b32.xlu0 %v290, 111
      %v449 = vpop.permute.xlu0 %448
      %vm450 = vcmp.lt.s32.totalorder %v296, 111
      %v451 = vsel %vm450, %v447, %v449
      %v452 = vsel %vm450, %v449, %v447
      %v454 = vlaneseq
      %v455 = vshrl.u32 %v454, 7
      %v456 = vsub.s32 0, %v455
      %v457 = vrot.slane %v269, %v456
      %v458 = vlaneseq
      %v459 = vshrl.u32 %v458, 7
      %v460 = vsub.s32 1, %v459
      %v461 = vrot.slane %v269, %v460
      %v464 = vmul.f32 %v451, %v457
      %v465 = vmul.f32 %v452, %v461
      %v466 = vadd.f32 %v311, %v331
      %v467 = vadd.f32 %v312, %v332
      %v468 = vadd.f32 %v466, %v351
      %v469 = vadd.f32 %v467, %v352
      %v470 = vmul.f32 %v311, 0.8660254
      %v471 = vmul.f32 %v312, 0.8660254
      %v472 = vmul.f32 %v351, -0.8660254
      %v473 = vmul.f32 %v352, -0.8660254
      %v474 = vadd.f32 %v470, %v472
      %v475 = vadd.f32 %v471, %v473
      %v476 = vmul.f32 %v311, 0.5
      %v477 = vmul.f32 %v312, 0.5
      %v478 = vsub.f32 0.0, %v331
      %v479 = vsub.f32 0.0, %v332
      %v480 = vadd.f32 %v476, %v478
      %v481 = vadd.f32 %v477, %v479
      %v482 = vmul.f32 %v351, 0.5
      %v483 = vmul.f32 %v352, 0.5
      %v484 = vadd.f32 %v480, %v482
      %v485 = vadd.f32 %v481, %v483
      %v486 = vadd.f32 %v371, %v384
      %v487 = vadd.f32 %v372, %v385
      %v488 = vadd.f32 %v486, %v404
      %v489 = vadd.f32 %v487, %v405
      %v490 = vmul.f32 %v371, 0.8660254
      %v491 = vmul.f32 %v372, 0.8660254
      %v492 = vmul.f32 %v404, -0.8660254
      %v493 = vmul.f32 %v405, -0.8660254
      %v494 = vadd.f32 %v490, %v492
      %v495 = vadd.f32 %v491, %v493
      %v496 = vmul.f32 %v371, 0.5
      %v497 = vmul.f32 %v372, 0.5
      %v498 = vsub.f32 0.0, %v384
      %v499 = vsub.f32 0.0, %v385
      %v500 = vadd.f32 %v496, %v498
      %v501 = vadd.f32 %v497, %v499
      %v502 = vmul.f32 %v404, 0.5
      %v503 = vmul.f32 %v405, 0.5
      %v504 = vadd.f32 %v500, %v502
      %v505 = vadd.f32 %v501, %v503
      %v506 = vadd.f32 %v424, %v444
      %v507 = vadd.f32 %v425, %v445
      %v508 = vadd.f32 %v506, %v464
      %v509 = vadd.f32 %v507, %v465
      %v510 = vmul.f32 %v424, 0.8660254
      %v511 = vmul.f32 %v425, 0.8660254
      %v512 = vmul.f32 %v464, -0.8660254
      %v513 = vmul.f32 %v465, -0.8660254
      %v514 = vadd.f32 %v510, %v512
      %v515 = vadd.f32 %v511, %v513
      %v516 = vmul.f32 %v424, 0.5
      %v517 = vmul.f32 %v425, 0.5
      %v518 = vsub.f32 0.0, %v444
      %v519 = vsub.f32 0.0, %v445
      %v520 = vadd.f32 %v516, %v518
      %v521 = vadd.f32 %v517, %v519
      %v522 = vmul.f32 %v464, 0.5
      %v523 = vmul.f32 %v465, 0.5
      %v524 = vadd.f32 %v520, %v522
      %v525 = vadd.f32 %v521, %v523
      %v526 = vadd.f32 %v468, %v488
      %v527 = vadd.f32 %v469, %v489
      %v528 = vadd.f32 %v526, %v508
      %v529 = vadd.f32 %v527, %v509
      %531 = vset.pattern.permute.xlu0 0
      %532 = vperm.xlu0 %531, %v270
      %v533 = vpop.permute.xlu0 %532
      %v535 = vmul.f32 %v528, %v533
      %v536 = vmul.f32 %v529, %v533
      %538 = vset.pattern.permute.xlu0 0
      %539 = vperm.xlu0 %538, %v279
      %v540 = vpop.permute.xlu0 %539
      %v542 = vadd.f32 %v535, %v540
      %v543 = vadd.f32 %v536, %v540
      %v544 = vmax.f32 %v542, 0.0
      %v545 = vmax.f32 %v543, 0.0
      %546 = vst [vmem:[#allocation2] sm:$0xff] %v544
      %547 = vst [vmem:[#allocation2 + $0x8] sm:$0xff] %v545
      %v548 = vadd.f32 %v474, %v494
      %v549 = vadd.f32 %v475, %v495
      %v550 = vadd.f32 %v548, %v514
      %v551 = vadd.f32 %v549, %v515
      %553 = vset.pattern.permute.xlu0 0
      %554 = vperm.xlu0 %553, %v271
      %v555 = vpop.permute.xlu0 %554
      %v557 = vmul.f32 %v550, %v555
      %v558 = vmul.f32 %v551, %v555
      %560 = vset.pattern.permute.xlu0 0
      %561 = vperm.xlu0 %560, %v280
      %v562 = vpop.permute.xlu0 %561
      %v564 = vadd.f32 %v557, %v562
      %v565 = vadd.f32 %v558, %v562
      %v566 = vmax.f32 %v564, 0.0
      %v567 = vmax.f32 %v565, 0.0
      %568 = vst [vmem:[#allocation2 + $0x10] sm:$0xff] %v566
      %569 = vst [vmem:[#allocation2 + $0x18] sm:$0xff] %v567
      %v570 = vadd.f32 %v484, %v504
      %v571 = vadd.f32 %v485, %v505
      %v572 = vadd.f32 %v570, %v524
      %v573 = vadd.f32 %v571, %v525
      %575 = vset.pattern.permute.xlu0 0
      %576 = vperm.xlu0 %575, %v272
      %v577 = vpop.permute.xlu0 %576
      %v579 = vmul.f32 %v572, %v577
      %v580 = vmul.f32 %v573, %v577
      %582 = vset.pattern.permute.xlu0 0
      %583 = vperm.xlu0 %582, %v281
      %v584 = vpop.permute.xlu0 %583
      %v586 = vadd.f32 %v579, %v584
      %v587 = vadd.f32 %v580, %v584
      %v588 = vmax.f32 %v586, 0.0
      %v589 = vmax.f32 %v587, 0.0
      %590 = vst [vmem:[#allocation2 + $0x20] sm:$0xff] %v588
      %591 = vst [vmem:[#allocation2 + $0x28] sm:$0xff] %v589
      %v592 = vmul.f32 %v468, 0.8660254
      %v593 = vmul.f32 %v469, 0.8660254
      %v594 = vmul.f32 %v508, -0.8660254
      %v595 = vmul.f32 %v509, -0.8660254
      %v596 = vadd.f32 %v592, %v594
      %v597 = vadd.f32 %v593, %v595
      %599 = vset.pattern.permute.xlu0 0
      %600 = vperm.xlu0 %599, %v273
      %v601 = vpop.permute.xlu0 %600
      %v603 = vmul.f32 %v596, %v601
      %v604 = vmul.f32 %v597, %v601
      %606 = vset.pattern.permute.xlu0 0
      %607 = vperm.xlu0 %606, %v282
      %v608 = vpop.permute.xlu0 %607
      %v610 = vadd.f32 %v603, %v608
      %v611 = vadd.f32 %v604, %v608
      %v612 = vmax.f32 %v610, 0.0
      %v613 = vmax.f32 %v611, 0.0
      %614 = vst [vmem:[#allocation2 + $0x30] sm:$0xff] %v612
      %615 = vst [vmem:[#allocation2 + $0x38] sm:$0xff] %v613
      %v616 = vmul.f32 %v474, 0.8660254
      %v617 = vmul.f32 %v475, 0.8660254
      %v618 = vmul.f32 %v514, -0.8660254
      %v619 = vmul.f32 %v515, -0.8660254
      %v620 = vadd.f32 %v616, %v618
      %v621 = vadd.f32 %v617, %v619
      %623 = vset.pattern.permute.xlu0 0
      %624 = vperm.xlu0 %623, %v274
      %v625 = vpop.permute.xlu0 %624
      %v627 = vmul.f32 %v620, %v625
      %v628 = vmul.f32 %v621, %v625
      %630 = vset.pattern.permute.xlu0 0
      %631 = vperm.xlu0 %630, %v283
      %v632 = vpop.permute.xlu0 %631
      %v634 = vadd.f32 %v627, %v632
      %v635 = vadd.f32 %v628, %v632
      %v636 = vmax.f32 %v634, 0.0
      %v637 = vmax.f32 %v635, 0.0
      %638 = vst [vmem:[#allocation2 + $0x40] sm:$0xff] %v636
      %639 = vst [vmem:[#allocation2 + $0x48] sm:$0xff] %v637
      %v640 = vmul.f32 %v484, 0.8660254
      %v641 = vmul.f32 %v485, 0.8660254
      %v642 = vmul.f32 %v524, -0.8660254
      %v643 = vmul.f32 %v525, -0.8660254
      %v644 = vadd.f32 %v640, %v642
      %v645 = vadd.f32 %v641, %v643
      %647 = vset.pattern.permute.xlu0 0
      %648 = vperm.xlu0 %647, %v275
      %v649 = vpop.permute.xlu0 %648
      %v651 = vmul.f32 %v644, %v649
      %v652 = vmul.f32 %v645, %v649
      %654 = vset.pattern.permute.xlu0 0
      %655 = vperm.xlu0 %654, %v284
      %v656 = vpop.permute.xlu0 %655
      %v658 = vadd.f32 %v651, %v656
      %v659 = vadd.f32 %v652, %v656
      %v660 = vmax.f32 %v658, 0.0
      %v661 = vmax.f32 %v659, 0.0
      %662 = vst [vmem:[#allocation2 + $0x50] sm:$0xff] %v660
      %663 = vst [vmem:[#allocation2 + $0x58] sm:$0xff] %v661
      %v664 = vmul.f32 %v468, 0.5
      %v665 = vmul.f32 %v469, 0.5
      %v666 = vsub.f32 0.0, %v488
      %v667 = vsub.f32 0.0, %v489
      %v668 = vadd.f32 %v664, %v666
      %v669 = vadd.f32 %v665, %v667
      %v670 = vmul.f32 %v508, 0.5
      %v671 = vmul.f32 %v509, 0.5
      %v672 = vadd.f32 %v668, %v670
      %v673 = vadd.f32 %v669, %v671
      %675 = vset.pattern.permute.xlu0 0
      %676 = vperm.xlu0 %675, %v276
      %v677 = vpop.permute.xlu0 %676
      %v679 = vmul.f32 %v672, %v677
      %v680 = vmul.f32 %v673, %v677
      %682 = vset.pattern.permute.xlu0 0
      %683 = vperm.xlu0 %682, %v285
      %v684 = vpop.permute.xlu0 %683
      %v686 = vadd.f32 %v679, %v684
      %v687 = vadd.f32 %v680, %v684
      %v688 = vmax.f32 %v686, 0.0
      %v689 = vmax.f32 %v687, 0.0
      %690 = vst [vmem:[#allocation2 + $0x60] sm:$0xff] %v688
      %691 = vst [vmem:[#allocation2 + $0x68] sm:$0xff] %v689
      %v692 = vmul.f32 %v474, 0.5
      %v693 = vmul.f32 %v475, 0.5
      %v694 = vsub.f32 0.0, %v494
      %v695 = vsub.f32 0.0, %v495
      %v696 = vadd.f32 %v692, %v694
      %v697 = vadd.f32 %v693, %v695
      %v698 = vmul.f32 %v514, 0.5
      %v699 = vmul.f32 %v515, 0.5
      %v700 = vadd.f32 %v696, %v698
      %v701 = vadd.f32 %v697, %v699
      %703 = vset.pattern.permute.xlu0 0
      %704 = vperm.xlu0 %703, %v277
      %v705 = vpop.permute.xlu0 %704
      %v707 = vmul.f32 %v700, %v705
      %v708 = vmul.f32 %v701, %v705
      %710 = vset.pattern.permute.xlu0 0
      %711 = vperm.xlu0 %710, %v286
      %v712 = vpop.permute.xlu0 %711
      %v714 = vadd.f32 %v707, %v712
      %v715 = vadd.f32 %v708, %v712
      %v716 = vmax.f32 %v714, 0.0
      %v717 = vmax.f32 %v715, 0.0
      %718 = vst [vmem:[#allocation2 + $0x70] sm:$0xff] %v716
      %719 = vst [vmem:[#allocation2 + $0x78] sm:$0xff] %v717
      %v720 = vmul.f32 %v484, 0.5
      %v721 = vmul.f32 %v485, 0.5
      %v722 = vsub.f32 0.0, %v504
      %v723 = vsub.f32 0.0, %v505
      %v724 = vadd.f32 %v720, %v722
      %v725 = vadd.f32 %v721, %v723
      %v726 = vmul.f32 %v524, 0.5
      %v727 = vmul.f32 %v525, 0.5
      %v728 = vadd.f32 %v724, %v726
      %v729 = vadd.f32 %v725, %v727
      %731 = vset.pattern.permute.xlu0 0
      %732 = vperm.xlu0 %731, %v278
      %v733 = vpop.permute.xlu0 %732
      %v735 = vmul.f32 %v728, %v733
      %v736 = vmul.f32 %v729, %v733
      %738 = vset.pattern.permute.xlu0 0
      %739 = vperm.xlu0 %738, %v287
      %v740 = vpop.permute.xlu0 %739
      %v742 = vadd.f32 %v735, %v740
      %v743 = vadd.f32 %v736, %v740
      %v744 = vmax.f32 %v742, 0.0
      %v745 = vmax.f32 %v743, 0.0
      %746 = vst [vmem:[#allocation2 + $0x80] sm:$0xff] %v744
      %747 = vst [vmem:[#allocation2 + $0x88] sm:$0xff] %v745
      %748 = vst [vmem:[#allocation2 + $0x90] sm:$0xff] %v289
      %749 = vst [vmem:[#allocation2 + $0x98] sm:$0xff] %v290
      %v750 = vld [vmem:[%s4] sm:$0xf]
      %v751 = vld [vmem:[#allocation2] sm:$0xff]
      %v752 = vld [vmem:[#allocation2 + $0x8] sm:$0xff]
      %v753 = vld [vmem:[#allocation2 + $0x10] sm:$0xff]
      %v754 = vld [vmem:[#allocation2 + $0x18] sm:$0xff]
      %v755 = vld [vmem:[#allocation2 + $0x20] sm:$0xff]
      %v756 = vld [vmem:[#allocation2 + $0x28] sm:$0xff]
      %v757 = vld [vmem:[#allocation2 + $0x30] sm:$0xff]
      %v758 = vld [vmem:[#allocation2 + $0x38] sm:$0xff]
      %v759 = vld [vmem:[#allocation2 + $0x40] sm:$0xff]
      %v760 = vld [vmem:[#allocation2 + $0x48] sm:$0xff]
      %v761 = vld [vmem:[#allocation2 + $0x50] sm:$0xff]
      %v762 = vld [vmem:[#allocation2 + $0x58] sm:$0xff]
      %v763 = vld [vmem:[#allocation2 + $0x60] sm:$0xff]
      %v764 = vld [vmem:[#allocation2 + $0x68] sm:$0xff]
      %v765 = vld [vmem:[#allocation2 + $0x70] sm:$0xff]
      %v766 = vld [vmem:[#allocation2 + $0x78] sm:$0xff]
      %v767 = vld [vmem:[#allocation2 + $0x80] sm:$0xff]
      %v768 = vld [vmem:[#allocation2 + $0x88] sm:$0xff]
      %v769 = vld [vmem:[#allocation2 + $0x90] sm:$0xff]
      %v770 = vld [vmem:[#allocation2 + $0x98] sm:$0xff]
      %v771 = vpack.c.bf16 %v753, %v751
      %v772 = vpack.c.bf16 %v754, %v752
      %v773 = vpack.c.bf16 %v757, %v755
      %v774 = vpack.c.bf16 %v758, %v756
      %v775 = vpack.c.bf16 %v761, %v759
      %v776 = vpack.c.bf16 %v762, %v760
      %v777 = vpack.c.bf16 %v765, %v763
      %v778 = vpack.c.bf16 %v766, %v764
      %v779 = vpack.c.bf16 %v769, %v767
      %v780 = vpack.c.bf16 %v770, %v768
      %v781 = vld [vmem:[%s5] sm:$0xff]
      %783 = vset.pattern.permute.xlu0 0
      %784 = vperm.xlu0 %783, %v781
      %v785 = vpop.permute.xlu0 %784
      %vm787 = vcmask 654336
      %v789 = vsel %vm787, %v750, 0
      %791 = vmatprep.subr.bf16.mxu0 %v772
      %792 = vmatpush1.bf16.msra.mxu0 %v771
      %793 = vmatprep.subr.bf16.mxu0 %v774
      %794 = vmatpush1.bf16.msra.mxu0 %v773
      %795 = vmatprep.subr.bf16.mxu0 %v776
      %796 = vmatpush1.bf16.msra.mxu0 %v775
      %797 = vmatprep.subr.bf16.mxu0 %v778
      %798 = vmatpush1.bf16.msra.mxu0 %v777
      %799 = vmatprep.subr.bf16.mxu0 %v780
      %800 = vmatpush1.bf16.msra.mxu0 %v779
      %801 = vmatprep.subr.bf16.mxu0 0
      %802 = vmatpush1.bf16.msra.mxu0 0
      %803 = vmatprep.subr.bf16.mxu0 0
      %804 = vmatpush1.bf16.msra.mxu0 0
      %805 = vmatprep.subr.bf16.mxu0 0
      %806 = vmatpush1.bf16.msra.mxu0 0
      %807 = vmatprep.subr.bf16.mxu0 0
      %808 = vmatpush1.bf16.msra.mxu0 0
      %809 = vmatprep.subr.bf16.mxu0 0
      %810 = vmatpush1.bf16.msra.mxu0 0
      %811 = vmatprep.subr.bf16.mxu0 0
      %812 = vmatpush1.bf16.msra.mxu0 0
      %813 = vmatprep.subr.bf16.mxu0 0
      %814 = vmatpush1.bf16.msra.mxu0 0
      %815 = vmatprep.subr.bf16.mxu0 0
      %816 = vmatpush1.bf16.msra.mxu0 0
      %817 = vmatprep.subr.bf16.mxu0 0
      %818 = vmatpush1.bf16.msra.mxu0 0
      %819 = vmatprep.subr.bf16.mxu0 0
      %820 = vmatpush1.bf16.msra.mxu0 0
      %821 = vmatprep.subr.bf16.mxu0 0
      %822 = vmatpush1.bf16.msra.mxu0 0
      %823 = vmatprep.mubr.bf16.mxu0 0
      %824 = vmatmul.mubr.bf16.gmra.mrb[0].mxu0 %v789
      %v825 = vpop.f32.mrb[0].mxu0
      %v826 = vadd.f32 %v785, %v825
      %v827 = vpop.f32.mrb[0].mxu0
      %v828 = vadd.f32 %v785, %v827
      %v829 = vpop.f32.mrb[0].mxu0
      %v830 = vpop.f32.mrb[0].mxu0
      %831 = vdwg.mxu0
      %v832 = vmax.f32 %v826, 0.0
      %v833 = vmax.f32 %v828, 0.0
      %834 = vst [vmem:[%s251] sm:$0xff] %v832
      %835 = vst [vmem:[%s251 + $0x8] sm:$0xff] %v833
      %p836 = scmp.lt.s32.totalorder %s17, 1
      %s837 = scalar_select %p836, %s17, 1
      %s838 = smul.addr %s837, 2
      %s839 = smul.addr %s838, 8
      %s840 = scalar_lea.vmem %s6, %s839
      // Predicated region
      $region45: #{harmonic_block_forward.1} parent=43 // pred_check
        %p841 = pneg %p166
      $region46: #{harmonic_block_forward.1} parent=43 // pred_check_branch
        %843 = sbr.rel (%p841) target = $region48
      $region47: #{harmonic_block_forward.1} parent=43 // pred_region
        _
      $region48: #{harmonic_block_forward.1} parent=43 // pred_fallthru
        _
    $region44: #{harmonic_block_forward.1} parent=5 // pred_fallthru
      _
    %p844 = scmp.le.s32.totalorder 2, %s12
    // Predicated region
    $region49: #{harmonic_block_forward.1} parent=5 // pred_check
      %p845 = pneg %p844
    $region50: #{harmonic_block_forward.1} parent=5 // pred_check_branch
      %847 = sbr.rel (%p845) target = $region52
    $region51: #{harmonic_block_forward.1} parent=5 // pred_region
      %s848 = ssub.s32 %s12, 2
      // Predicated region
      $region53: #{harmonic_block_forward.1} parent=51 // pred_check
        %p849 = pneg %p172
      $region54: #{harmonic_block_forward.1} parent=51 // pred_check_branch
        %851 = sbr.rel (%p849) target = $region56
      $region55: #{harmonic_block_forward.1} parent=51 // pred_region
        %p852 = scmp.lt.s32.totalorder %s18, 1
        %s853 = scalar_select %p852, %s18, 1
        %s854 = smul.addr %s853, 2
        %s855 = smul.addr %s854, 8
        %s856 = scalar_lea.vmem %s6, %s855
      $region56: #{harmonic_block_forward.1} parent=51 // pred_fallthru
        _
    $region52: #{harmonic_block_forward.1} parent=5 // pred_fallthru
      _
  $region6: #{harmonic_block_forward.1} parent=0 // loop_footer
    %s16 = sadd.s32 1, %s12
  $region7: #{harmonic_block_forward.1} parent=0 // loop_footer_branch
    %11 = sbr.rel target = $region3
  $region8: #{harmonic_block_forward.1} parent=0 // loop_exit
    _

</llo_original>
